<compile_context>
chip_gen: v6e
topology: v6e:2x2x1
jax: 0.10.0
libtpu: 0.0.40
codegen_flags: <defaults>
</compile_context>

<pallas_src>
import jax
import jax.numpy as jnp
from jax.experimental import pallas as pl
from jax.experimental.pallas import tpu as pltpu


def _gather_kernel(ids_ref, table_ref, out_ref, sem):
    # ids_ref:   (n_chunk,)            int32  SMEM (scalar-prefetched token ids)
    # table_ref: (vocab, hidden_words) dtype  HBM  (memory_space=pl.ANY)
    # out_ref:   (tok_block, hidden_words)    VMEM output block (auto-pipelined)
    # sem:       single shared DMA semaphore
    tb, _ = out_ref.shape
    base = pl.program_id(0) * tb

    # Issue all row-gather DMAs for this token block; every copy signals the
    # same semaphore. tb is static -> fully unrolled descriptor issue.
    for t in range(tb):
        row = ids_ref[base + t]               # scalar read from SMEM
        pltpu.make_async_copy(
            table_ref.at[pl.ds(row, 1), :],   # (1, hidden_words) row in HBM
            out_ref.at[pl.ds(t, 1), :],       # (1, hidden_words) row of block
            sem,
        ).start()

    # Single aggregated wait covering tok_block * hidden_words * 4 bytes
    # (dummy descriptor sized to the whole output block; never started).
    pltpu.make_async_copy(out_ref, out_ref, sem).wait()


def _gather_call(ids_chunk, table, tok_block):
    """One pallas_call gathering rows of `table` for `ids_chunk` tokens."""
    n_total = ids_chunk.shape[0]
    _, hid_w = table.shape
    return pl.pallas_call(
        _gather_kernel,
        out_shape=jax.ShapeDtypeStruct((n_total, hid_w), table.dtype),
        grid_spec=pltpu.PrefetchScalarGridSpec(
            num_scalar_prefetch=1,                      # ids -> SMEM
            grid=(n_total // tok_block,),
            in_specs=[
                pl.BlockSpec(memory_space=pl.ANY),      # table stays in HBM
            ],
            out_specs=pl.BlockSpec((tok_block, hid_w), lambda i, ids: (i, 0)),
            scratch_shapes=[pltpu.SemaphoreType.DMA(())],   # ONE shared DMA sem
        ),
        compiler_params=pltpu.CompilerParams(
            # independent token blocks -> shard across TensorCores on v7x
            dimension_semantics=("parallel",),
        ),
    )(ids_chunk, table)


def embedding_forward(input_ids, input_mask, weight, *, tok_block=256):
    """input_ids: [batch, seq] int; weight: [vocab, hidden].

    Returns {'input_embeds': [seq, batch, hidden]} matching the PyTorch module.
    (input_mask is accepted but unused, as in the reference forward.)
    """
    del input_mask  # not used by the reference forward
    batch, seq = input_ids.shape
    vocab, hidden = weight.shape
    dtype = weight.dtype
    itemsize = jnp.dtype(dtype).itemsize

    # --- pack sub-32-bit tables into uint32 words (clean 4B-aligned rows) ---
    if itemsize < 4:
        ratio = 4 // itemsize
        if hidden % ratio != 0:
            raise ValueError("hidden must pack evenly into 32-bit words")
        table = jax.lax.bitcast_convert_type(
            weight.reshape(vocab, hidden // ratio, ratio), jnp.uint32)
    elif itemsize == 4:
        table = weight
    else:
        raise ValueError("dtypes wider than 32 bits are not supported")
    hid_w = table.shape[1]                     # row width in 32-bit words

    # transpose(0, 1) then flatten tokens: [seq, batch] -> [seq*batch]
    ids_t = jnp.transpose(input_ids, (1, 0)).reshape(-1)
    n_tok = ids_t.shape[0]

    # PyTorch nn.Embedding raises on out-of-range ids; we clamp so the DMA
    # gather can never read outside the table (document upstream).
    ids_flat = jnp.clip(ids_t.astype(jnp.int32), 0, vocab - 1)

    # --- choose tok_block ---
    # (a) VMEM: double-buffered output block <= ~12 MiB (under v5e's 16 MiB
    #     scoped-VMEM default; far under v6e 128 MiB and v7x 64 MiB physical).
    vmem_cap = max(8, (12 * 1024 * 1024) // (2 * hid_w * 4))
    tb = min(tok_block, vmem_cap)
    # (b) keep >= 2 grid steps so v7x's 2 TensorCores both get work.
    tb = min(tb, max(8, n_tok // 2))
    # (c) sublane alignment (rows are 32-bit words, so multiple of 8 suffices).
    tb = max(8, (tb // 8) * 8)

    # pad token count to a multiple of the token block (padded ids gather
    # row 0 unconditionally -- needed so the aggregated wait always balances)
    n_pad = (-n_tok) % tb
    ids_padded = jnp.pad(ids_flat, (0, n_pad))
    n_total = n_tok + n_pad

    # SMEM guard: cap scalar-prefetched ids per call (~128K ids = 512 KiB),
    # chunking over token ranges for very long contexts.
    max_chunk = max(tb, ((1 << 17) // tb) * tb)
    outs = []
    for start in range(0, n_total, max_chunk):
        outs.append(_gather_call(ids_padded[start:start + max_chunk], table, tb))
    out_w = outs[0] if len(outs) == 1 else jnp.concatenate(outs, axis=0)

    # unpack back to the original dtype if we packed
    if itemsize < 4:
        out = jax.lax.bitcast_convert_type(out_w, dtype).reshape(n_total, hidden)
    else:
        out = out_w

    input_embeds = out[:n_tok].reshape(seq, batch, hidden)
    return {"input_embeds": input_embeds}
    # TODO(synk): TensorParallelEmbedding's tensor-parallel all-reduce /
    # process-group sharding has no single-device Pallas equivalent here.
    # TODO(synk): cross-step software-pipelining of the gather (pattern P4)
    # would further hide the per-step DMA tail on v7x; the aggregated wait +
    # larger blocks already amortize most of it.


if __name__ == "__main__":
    # Small, deterministic synthetic config (stand-in for Starcoder2Config).
    vocab_size = 256
    hidden_size = 128
    batch = 2
    seq = 8

    key = jax.random.PRNGKey(0)
    k_w, k_ids = jax.random.split(key)

    # float32 table (nn.Embedding default ~ N(0, 1)).
    weight_f32 = jax.random.normal(k_w, (vocab_size, hidden_size), dtype=jnp.float32)
    input_ids = jax.random.randint(k_ids, (batch, seq), 0, vocab_size, dtype=jnp.int32)
    input_mask = jnp.ones((batch, seq), dtype=jnp.bool_)

    out = embedding_forward(input_ids, input_mask, weight_f32)
    embeds = jax.block_until_ready(out["input_embeds"])
    ref = weight_f32[jnp.transpose(input_ids, (1, 0))]
    assert embeds.shape == (seq, batch, hidden_size), embeds.shape
    assert jnp.allclose(embeds, ref), "f32 mismatch vs reference"

    # bf16 table exercises the packed-uint32 gather path.
    weight_bf16 = weight_f32.astype(jnp.bfloat16)
    out_bf16 = embedding_forward(input_ids, input_mask, weight_bf16)
    embeds_bf16 = jax.block_until_ready(out_bf16["input_embeds"])
    ref_bf16 = weight_bf16[jnp.transpose(input_ids, (1, 0))]
    assert embeds_bf16.dtype == jnp.bfloat16
    assert jnp.array_equal(embeds_bf16, ref_bf16), "bf16 mismatch vs reference"

    print("KERNEL_OK")
</pallas_src>

<mosaic_0001>
module attributes {stable_mosaic.version = 11 : i64} {
  func.func @_gather_kernel(%arg0: i32, %arg1: memref<16xi32, #tpu.memory_space<smem>>, %arg2: memref<256x128xf32, #tpu.memory_space<any>>, %arg3: memref<8x128xf32, #tpu.memory_space<vmem>>, %arg4: memref<!tpu.dma_semaphore, #tpu.memory_space<semaphore_mem>>) attributes {dimension_semantics = [#tpu.dimension_semantics<parallel>], iteration_bounds = array<i64: 2>, scalar_prefetch = 1 : i64, scratch_operands = 1 : i64, tpu.core_type = #tpu.core_type<tc>, window_params = [{}, {transform_indices = @transform_1, window_bounds = array<i64: 8, 128>}]} {
    %c8_i32 = arith.constant 8 : i32
    %0 = arith.muli %arg0, %c8_i32 : i32
    %c0_i32 = arith.constant 0 : i32
    %1 = arith.addi %0, %c0_i32 : i32
    %2 = arith.index_cast %1 : i32 to index
    %3 = memref.load %arg1[%2] : memref<16xi32, #tpu.memory_space<smem>>
    %c0_i32_0 = arith.constant 0 : i32
    %4 = tpu.memref_slice %arg2[%3, %c0_i32_0] : memref<256x128xf32, #tpu.memory_space<any>> -> memref<1x128xf32, #tpu.memory_space<any>>
    %c0_i32_1 = arith.constant 0 : i32
    %c0_i32_2 = arith.constant 0 : i32
    %5 = tpu.memref_slice %arg3[%c0_i32_1, %c0_i32_2] : memref<8x128xf32, #tpu.memory_space<vmem>> -> memref<1x128xf32, #tpu.memory_space<vmem>>
    tpu.enqueue_dma source(%4 : memref<1x128xf32, #tpu.memory_space<any>>) target(%5 : memref<1x128xf32, #tpu.memory_space<vmem>>) target_semaphore(%arg4 : memref<!tpu.dma_semaphore, #tpu.memory_space<semaphore_mem>>)
    %c1_i32 = arith.constant 1 : i32
    %6 = arith.addi %0, %c1_i32 : i32
    %7 = arith.index_cast %6 : i32 to index
    %8 = memref.load %arg1[%7] : memref<16xi32, #tpu.memory_space<smem>>
    %c0_i32_3 = arith.constant 0 : i32
    %9 = tpu.memref_slice %arg2[%8, %c0_i32_3] : memref<256x128xf32, #tpu.memory_space<any>> -> memref<1x128xf32, #tpu.memory_space<any>>
    %c1_i32_4 = arith.constant 1 : i32
    %c0_i32_5 = arith.constant 0 : i32
    %10 = tpu.memref_slice %arg3[%c1_i32_4, %c0_i32_5] : memref<8x128xf32, #tpu.memory_space<vmem>> -> memref<1x128xf32, #tpu.memory_space<vmem>>
    tpu.enqueue_dma source(%9 : memref<1x128xf32, #tpu.memory_space<any>>) target(%10 : memref<1x128xf32, #tpu.memory_space<vmem>>) target_semaphore(%arg4 : memref<!tpu.dma_semaphore, #tpu.memory_space<semaphore_mem>>)
    %c2_i32 = arith.constant 2 : i32
    %11 = arith.addi %0, %c2_i32 : i32
    %12 = arith.index_cast %11 : i32 to index
    %13 = memref.load %arg1[%12] : memref<16xi32, #tpu.memory_space<smem>>
    %c0_i32_6 = arith.constant 0 : i32
    %14 = tpu.memref_slice %arg2[%13, %c0_i32_6] : memref<256x128xf32, #tpu.memory_space<any>> -> memref<1x128xf32, #tpu.memory_space<any>>
    %c2_i32_7 = arith.constant 2 : i32
    %c0_i32_8 = arith.constant 0 : i32
    %15 = tpu.memref_slice %arg3[%c2_i32_7, %c0_i32_8] : memref<8x128xf32, #tpu.memory_space<vmem>> -> memref<1x128xf32, #tpu.memory_space<vmem>>
    tpu.enqueue_dma source(%14 : memref<1x128xf32, #tpu.memory_space<any>>) target(%15 : memref<1x128xf32, #tpu.memory_space<vmem>>) target_semaphore(%arg4 : memref<!tpu.dma_semaphore, #tpu.memory_space<semaphore_mem>>)
    %c3_i32 = arith.constant 3 : i32
    %16 = arith.addi %0, %c3_i32 : i32
    %17 = arith.index_cast %16 : i32 to index
    %18 = memref.load %arg1[%17] : memref<16xi32, #tpu.memory_space<smem>>
    %c0_i32_9 = arith.constant 0 : i32
    %19 = tpu.memref_slice %arg2[%18, %c0_i32_9] : memref<256x128xf32, #tpu.memory_space<any>> -> memref<1x128xf32, #tpu.memory_space<any>>
    %c3_i32_10 = arith.constant 3 : i32
    %c0_i32_11 = arith.constant 0 : i32
    %20 = tpu.memref_slice %arg3[%c3_i32_10, %c0_i32_11] : memref<8x128xf32, #tpu.memory_space<vmem>> -> memref<1x128xf32, #tpu.memory_space<vmem>>
    tpu.enqueue_dma source(%19 : memref<1x128xf32, #tpu.memory_space<any>>) target(%20 : memref<1x128xf32, #tpu.memory_space<vmem>>) target_semaphore(%arg4 : memref<!tpu.dma_semaphore, #tpu.memory_space<semaphore_mem>>)
    %c4_i32 = arith.constant 4 : i32
    %21 = arith.addi %0, %c4_i32 : i32
    %22 = arith.index_cast %21 : i32 to index
    %23 = memref.load %arg1[%22] : memref<16xi32, #tpu.memory_space<smem>>
    %c0_i32_12 = arith.constant 0 : i32
    %24 = tpu.memref_slice %arg2[%23, %c0_i32_12] : memref<256x128xf32, #tpu.memory_space<any>> -> memref<1x128xf32, #tpu.memory_space<any>>
    %c4_i32_13 = arith.constant 4 : i32
    %c0_i32_14 = arith.constant 0 : i32
    %25 = tpu.memref_slice %arg3[%c4_i32_13, %c0_i32_14] : memref<8x128xf32, #tpu.memory_space<vmem>> -> memref<1x128xf32, #tpu.memory_space<vmem>>
    tpu.enqueue_dma source(%24 : memref<1x128xf32, #tpu.memory_space<any>>) target(%25 : memref<1x128xf32, #tpu.memory_space<vmem>>) target_semaphore(%arg4 : memref<!tpu.dma_semaphore, #tpu.memory_space<semaphore_mem>>)
    %c5_i32 = arith.constant 5 : i32
    %26 = arith.addi %0, %c5_i32 : i32
    %27 = arith.index_cast %26 : i32 to index
    %28 = memref.load %arg1[%27] : memref<16xi32, #tpu.memory_space<smem>>
    %c0_i32_15 = arith.constant 0 : i32
    %29 = tpu.memref_slice %arg2[%28, %c0_i32_15] : memref<256x128xf32, #tpu.memory_space<any>> -> memref<1x128xf32, #tpu.memory_space<any>>
    %c5_i32_16 = arith.constant 5 : i32
    %c0_i32_17 = arith.constant 0 : i32
    %30 = tpu.memref_slice %arg3[%c5_i32_16, %c0_i32_17] : memref<8x128xf32, #tpu.memory_space<vmem>> -> memref<1x128xf32, #tpu.memory_space<vmem>>
    tpu.enqueue_dma source(%29 : memref<1x128xf32, #tpu.memory_space<any>>) target(%30 : memref<1x128xf32, #tpu.memory_space<vmem>>) target_semaphore(%arg4 : memref<!tpu.dma_semaphore, #tpu.memory_space<semaphore_mem>>)
    %c6_i32 = arith.constant 6 : i32
    %31 = arith.addi %0, %c6_i32 : i32
    %32 = arith.index_cast %31 : i32 to index
    %33 = memref.load %arg1[%32] : memref<16xi32, #tpu.memory_space<smem>>
    %c0_i32_18 = arith.constant 0 : i32
    %34 = tpu.memref_slice %arg2[%33, %c0_i32_18] : memref<256x128xf32, #tpu.memory_space<any>> -> memref<1x128xf32, #tpu.memory_space<any>>
    %c6_i32_19 = arith.constant 6 : i32
    %c0_i32_20 = arith.constant 0 : i32
    %35 = tpu.memref_slice %arg3[%c6_i32_19, %c0_i32_20] : memref<8x128xf32, #tpu.memory_space<vmem>> -> memref<1x128xf32, #tpu.memory_space<vmem>>
    tpu.enqueue_dma source(%34 : memref<1x128xf32, #tpu.memory_space<any>>) target(%35 : memref<1x128xf32, #tpu.memory_space<vmem>>) target_semaphore(%arg4 : memref<!tpu.dma_semaphore, #tpu.memory_space<semaphore_mem>>)
    %c7_i32 = arith.constant 7 : i32
    %36 = arith.addi %0, %c7_i32 : i32
    %37 = arith.index_cast %36 : i32 to index
    %38 = memref.load %arg1[%37] : memref<16xi32, #tpu.memory_space<smem>>
    %c0_i32_21 = arith.constant 0 : i32
    %39 = tpu.memref_slice %arg2[%38, %c0_i32_21] : memref<256x128xf32, #tpu.memory_space<any>> -> memref<1x128xf32, #tpu.memory_space<any>>
    %c7_i32_22 = arith.constant 7 : i32
    %c0_i32_23 = arith.constant 0 : i32
    %40 = tpu.memref_slice %arg3[%c7_i32_22, %c0_i32_23] : memref<8x128xf32, #tpu.memory_space<vmem>> -> memref<1x128xf32, #tpu.memory_space<vmem>>
    tpu.enqueue_dma source(%39 : memref<1x128xf32, #tpu.memory_space<any>>) target(%40 : memref<1x128xf32, #tpu.memory_space<vmem>>) target_semaphore(%arg4 : memref<!tpu.dma_semaphore, #tpu.memory_space<semaphore_mem>>)
    tpu.wait_dma2 semaphore(%arg4 : memref<!tpu.dma_semaphore, #tpu.memory_space<semaphore_mem>>) src(%arg3 : memref<8x128xf32, #tpu.memory_space<vmem>>) dst(%arg3 : memref<8x128xf32, #tpu.memory_space<vmem>>)
    return
  }
  func.func @transform_1(%arg0: i32, %arg1: memref<16xi32, #tpu.memory_space<smem>>) -> (i32, i32) {
    %c0_i32 = arith.constant 0 : i32
    %c0_i32_0 = arith.constant 0 : i32
    return %arg0, %c0_i32 : i32, i32
  }
}

</mosaic_0001>

<llo_original>
// kernel: tpu_custom_call.1
$region0: #{tpu_custom_call.1}
  #allocation0 [shape = 'u32[]', space=smem, size = 0x4, offset = 0x4, fixed_abs, tag = 'smem constant byte address 0x4 - core index']
  #allocation1 [shape = 'u32[144,128]{1,0:T(1,128)}', space=vmem, size = 0x12000, scoped, tag = 'internal scratch']
  #allocation2 [shape = 's32[1]{0}', space=sflag, size = 0x4, scoped, tag = 'scratch operand']
  #allocation3 [shape = 's32[1]{0}', space=sflag, size = 0x4, scoped, tag = 'scoped memory for tpu_custom_call.1']
  #allocation4 [shape = 'u8[512]{0}', space=smem, size = 0x200, scoped, tag = 'prefetched SMEM operand 0']
  #allocation7 [shape = 's32[]', space=sflag, size = 0x4, offset = 0, fixed_abs, tag = 'sflag constant byte address 0x0 - dummy sync flag']
  #allocation8 [shape = 's32[]', space=sflag, size = 0x4, offset = 0, fixed_abs, tag = 'sflag constant byte address 0x0 - dummy sync flag']
  #allocation9 [shape = 'u32[]', space=smem, size = 0x4, offset = 0x44, fixed_abs, tag = 'smem constant byte address 0x44 - assertion arg 0']
  #allocation10 [shape = 'u32[]', space=smem, size = 0x4, offset = 0x48, fixed_abs, tag = 'smem constant byte address 0x48 - assertion arg 1']
  #allocation11 [shape = 's32[]', space=sflag, size = 0x4, offset = 0, fixed_abs, tag = 'sflag constant byte address 0x0 - dummy sync flag']
  #allocation12 [shape = 's32[]', space=sflag, size = 0x4, offset = 0, fixed_abs, tag = 'sflag constant byte address 0x0 - dummy sync flag']
  #allocation13 [shape = 's32[]', space=sflag, size = 0x4, offset = 0, fixed_abs, tag = 'sflag constant byte address 0x0 - dummy sync flag']
  #allocation14 [shape = 's32[]', space=sflag, size = 0x4, offset = 0, fixed_abs, tag = 'sflag constant byte address 0x0 - dummy sync flag']
  #allocation15 [shape = 's32[]', space=sflag, size = 0x4, offset = 0, fixed_abs, tag = 'sflag constant byte address 0x0 - dummy sync flag']
  #allocation16 [shape = 's32[]', space=sflag, size = 0x4, offset = 0, fixed_abs, tag = 'sflag constant byte address 0x0 - dummy sync flag']
  #allocation17 [shape = 's32[]', space=sflag, size = 0x4, offset = 0, fixed_abs, tag = 'sflag constant byte address 0x0 - dummy sync flag']
  #allocation18 [shape = 's32[]', space=sflag, size = 0x4, offset = 0, fixed_abs, tag = 'sflag constant byte address 0x0 - dummy sync flag']
  #allocation19 [shape = 's32[]', space=sflag, size = 0x4, offset = 0, fixed_abs, tag = 'sflag constant byte address 0x0 - dummy sync flag']
  #allocation20 [shape = 's32[]', space=sflag, size = 0x4, offset = 0, fixed_abs, tag = 'sflag constant byte address 0x0 - dummy sync flag']
  #allocation21 [shape = 's32[]', space=sflag, size = 0x4, offset = 0, fixed_abs, tag = 'sflag constant byte address 0x0 - dummy sync flag']
  #allocation22 [shape = 's32[]', space=sflag, size = 0x4, offset = 0, fixed_abs, tag = 'sflag constant byte address 0x0 - dummy sync flag']
  #allocation23 [shape = 's32[]', space=sflag, size = 0x4, offset = 0, fixed_abs, tag = 'sflag constant byte address 0x0 - dummy sync flag']
  #allocation24 [shape = 's32[]', space=sflag, size = 0x4, offset = 0, fixed_abs, tag = 'sflag constant byte address 0x0 - dummy sync flag']
  %s0 = inlined_call_operand.hbm [shape: s32[16], index: 0, kind: input, shape index: {}]
  %s1 = inlined_call_operand.hbm [shape: f32[256,128], index: 1, kind: input, shape index: {}]
  %s2 = inlined_call_operand.hbm [shape: f32[16,128], index: 2, kind: output, shape index: {}]
  %s3 = sld [smem:[#allocation0]]
  $region57: #{tpu_custom_call.1} parent=0
    _
  %s5 = ssub.s32 1, %s3
  %s6 = scalar_select 0, %s5, %s3
  %8 = dma.hbm_to_smem %s0, 16, [#allocation4], [#allocation3]
  %9 = dma.done [#allocation3], 16
  %10 = sfence
  $region1: #{tpu_custom_call.1} parent=0
    #allocation5 [shape = 'u8[8192]{0}', space=vmem, size = 0x2000, scoped, tag = 'output window, operand 0']
    #allocation6 [shape = 's32[2]{0}', space=sflag, size = 0x8, scoped, tag = 'scoped memory for tpu_custom_call.1']
    %11 = vsyncpa [#allocation6], 0
    %s12 = scalar_lea.sflag [#allocation6], 1
    %13 = vsyncpa %s12, 0
    loop: start=0, step=1, limit=3
    $region2: #{tpu_custom_call.1} parent=1 // loop_pre_header
      _
    $region3: #{tpu_custom_call.1} parent=1 // loop_header
      %s15 = sphi 0, %s19
      %p16 = scmp.ge.s32.totalorder %s15, 3
      %s24 = sphi 0, %s26
      %s27 = sphi 0, %s24
      %s37 = sphi 0, %s27
    $region4: #{tpu_custom_call.1} parent=1 // loop_header_branch
      %18 = sbr.rel (%p16) target = $region8
    $region5: #{tpu_custom_call.1} parent=1 // loop_body
      %s20 = ssub.s32 %s15, 1
      %s21 = sadd.s32 %s15, 1
      %s22 = ssub.s32 %s15, %s21
      %p23 = scmp.eq.s32.totalorder %s22, 0
      %s25 = sadd.s32 %s24, 1
      %s26 = scalar_select %p23, %s24, %s25
      %p28 = pneg %p23
      %p29 = scmp.eq.s32.totalorder %s15, 1
      %p30 = por %p28, %p29
      %p31 = scmp.ne.s32.totalorder %s24, %s27
      %p32 = scmp.eq.s32.totalorder %s15, 0
      %p33 = por %p31, %p32
      %p34 = scmp.ne.s32.totalorder %s24, %s27
      %p35 = scmp.eq.s32.totalorder %s20, 1
      %p36 = por %p34, %p35
      %p38 = scmp.ne.s32.totalorder %s27, %s37
      %p39 = scmp.eq.s32.totalorder %s20, 0
      %p40 = por %p38, %p39
      %p41 = scmp.lt.s32.totalorder %s15, 2
      // Predicated region
      $region9: #{tpu_custom_call.1} parent=5 // pred_check
        %p42 = pneg %p41
      $region10: #{tpu_custom_call.1} parent=5 // pred_check_branch
        %44 = sbr.rel (%p42) target = $region12
      $region11: #{tpu_custom_call.1} parent=5 // pred_region
        %p45 = pneg %p33
        %p46 = pneg %p30
        %s47 = sand.u32 %s24, 1
        %s48 = scalar_lea.sflag [#allocation6], %s47
        %s49 = sand.u32 %s24, 1
        %s50 = smul.addr %s49, 8
        %s51 = scalar_lea.vmem [#allocation5], %s50
        %s52 = smul.u32 %s15, 8
        %s53 = sld [smem:[#allocation4 + %s52]]
        %s54 = smul.addr %s53, 16
        %s55 = scalar_lea.hbm %s1, %s54
        // Predicated region
        $region13: #{tpu_custom_call.1} parent=11 // pred_check
          _
        $region14: #{tpu_custom_call.1} parent=11 // pred_check_branch
          %57 = sbr.rel target = $region16
        $region15: #{tpu_custom_call.1} parent=11 // pred_region
          %58 = sst [smem:[#allocation9]] [#allocation8]
          %59 = sst [smem:[#allocation10]] [#allocation7]
        $region16: #{tpu_custom_call.1} parent=11 // pred_fallthru
          _
        %61 = shalt.err (0)
        %s63 = sshll.u32 %s51, 4
        %s64 = int_to_ptr.vmem [resolvable:$true] %s63
        %66 = dma.hbm_to_vmem [thread:$0]  %s55, 16, %s64, [#allocation2]
        %s67 = sadd.s32 %s52, 1
        %s68 = sld [smem:[#allocation4 + %s67]]
        %s69 = smul.addr %s68, 16
        %s70 = scalar_lea.hbm %s1, %s69
        %s71 = scalar_lea.vmem %s51, 1 [#allocation5]
        // Predicated region
        $region17: #{tpu_custom_call.1} parent=11 // pred_check
          _
        $region18: #{tpu_custom_call.1} parent=11 // pred_check_branch
          %73 = sbr.rel target = $region20
        $region19: #{tpu_custom_call.1} parent=11 // pred_region
          %74 = sst [smem:[#allocation9]] [#allocation12]
          %75 = sst [smem:[#allocation10]] [#allocation11]
        $region20: #{tpu_custom_call.1} parent=11 // pred_fallthru
          _
        %77 = shalt.err (0)
        %s79 = sshll.u32 %s71, 4
        %s80 = int_to_ptr.vmem [resolvable:$true] %s79
        %82 = dma.hbm_to_vmem [thread:$0]  %s70, 16, %s80, [#allocation2]
        %s83 = sadd.s32 %s52, 2
        %s84 = sld [smem:[#allocation4 + %s83]]
        %s85 = smul.addr %s84, 16
        %s86 = scalar_lea.hbm %s1, %s85
        %s87 = scalar_lea.vmem %s51, 2 [#allocation5]
        // Predicated region
        $region21: #{tpu_custom_call.1} parent=11 // pred_check
          _
        $region22: #{tpu_custom_call.1} parent=11 // pred_check_branch
          %89 = sbr.rel target = $region24
        $region23: #{tpu_custom_call.1} parent=11 // pred_region
          %90 = sst [smem:[#allocation9]] [#allocation14]
          %91 = sst [smem:[#allocation10]] [#allocation13]
        $region24: #{tpu_custom_call.1} parent=11 // pred_fallthru
          _
        %93 = shalt.err (0)
        %s95 = sshll.u32 %s87, 4
        %s96 = int_to_ptr.vmem [resolvable:$true] %s95
        %98 = dma.hbm_to_vmem [thread:$0]  %s86, 16, %s96, [#allocation2]
        %s99 = sadd.s32 %s52, 3
        %s100 = sld [smem:[#allocation4 + %s99]]
        %s101 = smul.addr %s100, 16
        %s102 = scalar_lea.hbm %s1, %s101
        %s103 = scalar_lea.vmem %s51, 3 [#allocation5]
        // Predicated region
        $region25: #{tpu_custom_call.1} parent=11 // pred_check
          _
        $region26: #{tpu_custom_call.1} parent=11 // pred_check_branch
          %105 = sbr.rel target = $region28
        $region27: #{tpu_custom_call.1} parent=11 // pred_region
          %106 = sst [smem:[#allocation9]] [#allocation16]
          %107 = sst [smem:[#allocation10]] [#allocation15]
        $region28: #{tpu_custom_call.1} parent=11 // pred_fallthru
          _
        %109 = shalt.err (0)
        %s111 = sshll.u32 %s103, 4
        %s112 = int_to_ptr.vmem [resolvable:$true] %s111
        %114 = dma.hbm_to_vmem [thread:$0]  %s102, 16, %s112, [#allocation2]
        %s115 = sadd.s32 %s52, 4
        %s116 = sld [smem:[#allocation4 + %s115]]
        %s117 = smul.addr %s116, 16
        %s118 = scalar_lea.hbm %s1, %s117
        %s119 = scalar_lea.vmem %s51, 4 [#allocation5]
        // Predicated region
        $region29: #{tpu_custom_call.1} parent=11 // pred_check
          _
        $region30: #{tpu_custom_call.1} parent=11 // pred_check_branch
          %121 = sbr.rel target = $region32
        $region31: #{tpu_custom_call.1} parent=11 // pred_region
          %122 = sst [smem:[#allocation9]] [#allocation18]
          %123 = sst [smem:[#allocation10]] [#allocation17]
        $region32: #{tpu_custom_call.1} parent=11 // pred_fallthru
          _
        %125 = shalt.err (0)
        %s127 = sshll.u32 %s119, 4
        %s128 = int_to_ptr.vmem [resolvable:$true] %s127
        %130 = dma.hbm_to_vmem [thread:$0]  %s118, 16, %s128, [#allocation2]
        %s131 = sadd.s32 %s52, 5
        %s132 = sld [smem:[#allocation4 + %s131]]
        %s133 = smul.addr %s132, 16
        %s134 = scalar_lea.hbm %s1, %s133
        %s135 = scalar_lea.vmem %s51, 5 [#allocation5]
        // Predicated region
        $region33: #{tpu_custom_call.1} parent=11 // pred_check
          _
        $region34: #{tpu_custom_call.1} parent=11 // pred_check_branch
          %137 = sbr.rel target = $region36
        $region35: #{tpu_custom_call.1} parent=11 // pred_region
          %138 = sst [smem:[#allocation9]] [#allocation20]
          %139 = sst [smem:[#allocation10]] [#allocation19]
        $region36: #{tpu_custom_call.1} parent=11 // pred_fallthru
          _
        %141 = shalt.err (0)
        %s143 = sshll.u32 %s135, 4
        %s144 = int_to_ptr.vmem [resolvable:$true] %s143
        %146 = dma.hbm_to_vmem [thread:$0]  %s134, 16, %s144, [#allocation2]
        %s147 = sadd.s32 %s52, 6
        %s148 = sld [smem:[#allocation4 + %s147]]
        %s149 = smul.addr %s148, 16
        %s150 = scalar_lea.hbm %s1, %s149
        %s151 = scalar_lea.vmem %s51, 6 [#allocation5]
        // Predicated region
        $region37: #{tpu_custom_call.1} parent=11 // pred_check
          _
        $region38: #{tpu_custom_call.1} parent=11 // pred_check_branch
          %153 = sbr.rel target = $region40
        $region39: #{tpu_custom_call.1} parent=11 // pred_region
          %154 = sst [smem:[#allocation9]] [#allocation22]
          %155 = sst [smem:[#allocation10]] [#allocation21]
        $region40: #{tpu_custom_call.1} parent=11 // pred_fallthru
          _
        %157 = shalt.err (0)
        %s159 = sshll.u32 %s151, 4
        %s160 = int_to_ptr.vmem [resolvable:$true] %s159
        %162 = dma.hbm_to_vmem [thread:$0]  %s150, 16, %s160, [#allocation2]
        %s163 = sadd.s32 %s52, 7
        %s164 = sld [smem:[#allocation4 + %s163]]
        %s165 = smul.addr %s164, 16
        %s166 = scalar_lea.hbm %s1, %s165
        %s167 = scalar_lea.vmem %s51, 7 [#allocation5]
        // Predicated region
        $region41: #{tpu_custom_call.1} parent=11 // pred_check
          _
        $region42: #{tpu_custom_call.1} parent=11 // pred_check_branch
          %169 = sbr.rel target = $region44
        $region43: #{tpu_custom_call.1} parent=11 // pred_region
          %170 = sst [smem:[#allocation9]] [#allocation24]
          %171 = sst [smem:[#allocation10]] [#allocation23]
        $region44: #{tpu_custom_call.1} parent=11 // pred_fallthru
          _
        %173 = shalt.err (0)
        %s175 = sshll.u32 %s167, 4
        %s176 = int_to_ptr.vmem [resolvable:$true] %s175
        %178 = dma.hbm_to_vmem [thread:$0]  %s166, 16, %s176, [#allocation2]
        %s179 = smul.u32 8, 1
        %s180 = sshll.u32 %s179, 4
        %181 = dma.done [#allocation2], %s180
        %s182 = sand.u32 %s24, 1
        %s183 = scalar_lea.sflag [#allocation6], %s182
        %s184 = sand.u32 %s24, 1
        %s185 = smul.addr %s184, 8
        %s186 = scalar_lea.vmem [#allocation5], %s185
        // Predicated region
        $region45: #{tpu_custom_call.1} parent=11 // pred_check
          %p187 = pneg %p30
        $region46: #{tpu_custom_call.1} parent=11 // pred_check_branch
          %189 = sbr.rel (%p187) target = $region48
        $region47: #{tpu_custom_call.1} parent=11 // pred_region
          %s191 = ssub.s32 128, 128
          %192 = vsyncadd %s183, %s191
          %s193 = smul.addr %s15, 128
          %s194 = scalar_lea.hbm %s2, %s193
          %s196 = sshll.u32 %s186, 4
          %s197 = int_to_ptr.vmem [resolvable:$true] %s196
          %199 = dma.vmem_to_hbm [thread:$0]  %s197, 128, %s194, %s183
        $region48: #{tpu_custom_call.1} parent=11 // pred_fallthru
          _
      $region12: #{tpu_custom_call.1} parent=5 // pred_fallthru
        _
      %p200 = scmp.le.s32.totalorder 1, %s15
      // Predicated region
      $region49: #{tpu_custom_call.1} parent=5 // pred_check
        %p201 = pneg %p200
      $region50: #{tpu_custom_call.1} parent=5 // pred_check_branch
        %203 = sbr.rel (%p201) target = $region52
      $region51: #{tpu_custom_call.1} parent=5 // pred_region
        %s204 = ssub.s32 %s15, 1
        // Predicated region
        $region53: #{tpu_custom_call.1} parent=51 // pred_check
          %p205 = pneg %p36
        $region54: #{tpu_custom_call.1} parent=51 // pred_check_branch
          %207 = sbr.rel (%p205) target = $region56
        $region55: #{tpu_custom_call.1} parent=51 // pred_region
          %s208 = sand.u32 %s27, 1
          %s209 = scalar_lea.sflag [#allocation6], %s208
          %s210 = sand.u32 %s27, 1
          %s211 = smul.addr %s210, 8
          %s212 = scalar_lea.vmem [#allocation5], %s211
          %213 = dma.done %s209, 128
        $region56: #{tpu_custom_call.1} parent=51 // pred_fallthru
          _
      $region52: #{tpu_custom_call.1} parent=5 // pred_fallthru
        _
    $region6: #{tpu_custom_call.1} parent=1 // loop_footer
      %s19 = sadd.s32 1, %s15
    $region7: #{tpu_custom_call.1} parent=1 // loop_footer_branch
      %14 = sbr.rel target = $region3
    $region8: #{tpu_custom_call.1} parent=1 // loop_exit
      _
    %214 = vsyncpa [#allocation6], 1
    %s215 = scalar_lea.sflag [#allocation6], 1
    %216 = vsyncpa %s215, 1
  %217 = vsyncmov [#allocation2]
  %s218 = vpop.sfrf %217
  %p219 = scmp.eq.s32.totalorder %s218, 0
  %p220 = pneg %p219
  %222 = shalt.err (%p220)

</llo_original>
